<compile_context>
chip_gen: v6e
topology: v6e:2x2x1
jax: 0.10.0
libtpu: 0.0.40
codegen_flags: <defaults>
</compile_context>

<pallas_src>
import functools

import jax
import jax.numpy as jnp
from jax.experimental import pallas as pl
from jax.experimental.pallas import tpu as pltpu


def _pad_to(n, m):
    return ((n + m - 1) // m) * m


def _lnn_kernel(x_ref, w_ref, u_ref, invtau_ref, decay_ref, lw_ref, lb_ref,
                out_ref, xw_ref, *, seq, batch_p, inp, use_bf16_matmul):
    """Single-invocation kernel: whole problem resident in VMEM / vregs.

    x_ref:      (seq*batch_p, inp)     time-major, batch padded to 8 sublanes
    w_ref:      (inp, hidden_p)        hidden zero-padded to 128 lanes
    u_ref:      (hidden_p, hidden_p)   zero-padded
    invtau_ref: (1, hidden_p)          1/tau   (0 in padded lanes)
    decay_ref:  (1, hidden_p)          1-1/tau (0 in padded lanes; irrelevant)
    lw_ref:     (1, hidden_p)          head weight row (0 in padded lanes)
    lb_ref:     (1, 1) in SMEM         head bias (scalar path)
    out_ref:    (batch_p, 1)
    xw_ref:     (seq*batch_p, hidden_p) VMEM scratch for the input projection
    """
    hidden_p = u_ref.shape[1]

    # ---- input projection, hoisted out of the recurrence -------------------
    if inp == 1:
        # (S*Bp, 1) * (1, Hp): VPU broadcast multiply — avoids a degenerate
        # K=1 MXU matmul and its single-lane operand relayout.
        xw_ref[...] = x_ref[...] * w_ref[...]
    else:
        xw_ref[...] = jnp.dot(x_ref[...], w_ref[...],
                              preferred_element_type=jnp.float32)

    u = u_ref[...]
    if use_bf16_matmul:
        u = u.astype(jnp.bfloat16)

    # Hoist broadcasts / loop-invariant terms out of the serial chain.
    inv_tau = jnp.broadcast_to(invtau_ref[...], (batch_p, hidden_p))
    decay = jnp.broadcast_to(decay_ref[...], (batch_p, hidden_p))

    def step(t, h):
        # batch_p is a multiple of 8 -> every slice is vreg-aligned (8, 128)k.
        off = pl.multiple_of(t * batch_p, 8)
        xw_t = xw_ref[pl.ds(off, batch_p), :]
        hm = h.astype(jnp.bfloat16) if use_bf16_matmul else h
        pre = xw_t + jnp.dot(hm, u, preferred_element_type=jnp.float32)
        # h + (tanh(pre) - h)/tau  ==  h*(1 - 1/tau) + tanh(pre)*(1/tau)
        return h * decay + jnp.tanh(pre) * inv_tau

    h0 = jnp.zeros((batch_p, hidden_p), jnp.float32)
    # Partial unroll keeps LLO scheduling visibility while bounding live
    # ranges / compile time as seq grows (fully unrolled at small seq).
    h = jax.lax.fori_loop(0, seq, step, h0, unroll=min(seq, 8))

    # Linear head as a lane reduction (avoids an N=1 MXU matmul); bias comes
    # off the scalar path.
    out_ref[...] = (jnp.sum(h * lw_ref[...], axis=-1, keepdims=True)
                    + lb_ref[0, 0])


def make_lnn_params(W, U, tau, lw, lb):
    """Pad/derive parameters ONCE at init (not per forward call)."""
    inp, hidden = W.shape
    hidden_p = max(128, _pad_to(hidden, 128))
    ph = hidden_p - hidden
    inv_tau = (1.0 / tau).reshape(1, hidden).astype(jnp.float32)
    return dict(
        W=jnp.pad(W.astype(jnp.float32), ((0, 0), (0, ph))),
        U=jnp.pad(U.astype(jnp.float32), ((0, ph), (0, ph))),
        inv_tau=jnp.pad(inv_tau, ((0, 0), (0, ph))),
        decay=jnp.pad(1.0 - inv_tau, ((0, 0), (0, ph))),
        lw=jnp.pad(lw.reshape(1, hidden).astype(jnp.float32),
                   ((0, 0), (0, ph))),
        lb=lb.reshape(1, 1).astype(jnp.float32),
    )


@functools.partial(jax.jit, static_argnames=("use_bf16_matmul",))
def lnn_apply(params, x, use_bf16_matmul=False):
    """x: (batch, seq, input) f32 -> (batch, 1) f32."""
    batch, seq, inp = x.shape
    hidden_p = params["U"].shape[1]
    batch_p = max(8, _pad_to(batch, 8))

    # Time-major, batch padded to a full 8-sublane group so every per-step
    # slice of xw is exactly one aligned vreg row-group.
    x_tm = jnp.transpose(x, (1, 0, 2)).astype(jnp.float32)       # (S, B, I)
    x_tm = jnp.pad(x_tm, ((0, 0), (0, batch_p - batch), (0, 0)))
    x2d = x_tm.reshape(seq * batch_p, inp)

    kernel = functools.partial(_lnn_kernel, seq=seq, batch_p=batch_p, inp=inp,
                               use_bf16_matmul=use_bf16_matmul)
    vmem = pl.BlockSpec(memory_space=pltpu.MemorySpace.VMEM)
    smem = pl.BlockSpec(memory_space=pltpu.MemorySpace.SMEM)

    out_p = pl.pallas_call(
        kernel,
        out_shape=jax.ShapeDtypeStruct((batch_p, 1), jnp.float32),
        in_specs=[vmem, vmem, vmem, vmem, vmem, vmem, smem],
        out_specs=vmem,
        scratch_shapes=[pltpu.VMEM((seq * batch_p, hidden_p), jnp.float32)],
    )(x2d, params["W"], params["U"], params["inv_tau"], params["decay"],
      params["lw"], params["lb"])
    return out_p[:batch]


def ref_forward(x, W, U, tau, lw, lb):
    """Pure-JAX reference replicating the PyTorch forward."""
    h = jnp.zeros((x.shape[0], U.shape[0]), jnp.float32)
    for t in range(x.shape[1]):
        dh = jnp.tanh(x[:, t, :] @ W + h @ U) - h
        h = h + dh / tau
    return h @ lw + lb


if __name__ == "__main__":
    # Module defaults: input_size=1, hidden_size=64.  Small seq/batch.
    batch, seq, inp, hidden = 2, 8, 1, 64

    key = jax.random.PRNGKey(0)
    k_x, k_w, k_u, k_lw, k_lb = jax.random.split(key, 5)

    x = jax.random.normal(k_x, (batch, seq, inp), dtype=jnp.float32)

    # Deterministic parameter init (matches the __init__ shapes/scales).
    W = 0.1 * jax.random.normal(k_w, (inp, hidden), dtype=jnp.float32)
    U = 0.1 * jax.random.normal(k_u, (hidden, hidden), dtype=jnp.float32)
    tau = jnp.ones((hidden,), dtype=jnp.float32)
    # nn.Linear(hidden, 1): uniform(-1/sqrt(hidden), 1/sqrt(hidden))
    bound = 1.0 / (hidden ** 0.5)
    lw = jax.random.uniform(k_lw, (hidden, 1), jnp.float32, -bound, bound)
    lb = jax.random.uniform(k_lb, (1,), jnp.float32, -bound, bound)

    params = make_lnn_params(W, U, tau, lw, lb)   # padded once at init
    out = jax.block_until_ready(lnn_apply(params, x))
    ref = ref_forward(x, W, U, tau, lw, lb)

    assert out.shape == (batch, 1)
    assert jnp.allclose(out, ref, atol=1e-5, rtol=1e-5), (out, ref)

    print("KERNEL_OK")
</pallas_src>

<mosaic_0001>
module attributes {stable_mosaic.version = 11 : i64} {
  func.func @_lnn_kernel(%arg0: memref<64x1xf32, #tpu.memory_space<vmem>>, %arg1: memref<1x128xf32, #tpu.memory_space<vmem>>, %arg2: memref<128x128xf32, #tpu.memory_space<vmem>>, %arg3: memref<1x128xf32, #tpu.memory_space<vmem>>, %arg4: memref<1x128xf32, #tpu.memory_space<vmem>>, %arg5: memref<1x128xf32, #tpu.memory_space<vmem>>, %arg6: memref<1x1xf32, #tpu.memory_space<smem>>, %arg7: memref<8x1xf32, #tpu.memory_space<vmem>>, %arg8: memref<64x128xf32, #tpu.memory_space<vmem>>) attributes {dimension_semantics = [], scalar_prefetch = 0 : i64, scratch_operands = 1 : i64, tpu.core_type = #tpu.core_type<tc>} {
    %c0 = arith.constant 0 : index
    %c0_0 = arith.constant 0 : index
    %0 = vector.load %arg0[%c0, %c0_0] : memref<64x1xf32, #tpu.memory_space<vmem>>, vector<64x1xf32>
    %c0_1 = arith.constant 0 : index
    %c0_2 = arith.constant 0 : index
    %1 = vector.load %arg1[%c0_1, %c0_2] : memref<1x128xf32, #tpu.memory_space<vmem>>, vector<1x128xf32>
    %2 = vector.broadcast %0 : vector<64x1xf32> to vector<64x128xf32>
    %3 = vector.broadcast %1 : vector<1x128xf32> to vector<64x128xf32>
    %4 = arith.mulf %2, %3 : vector<64x128xf32>
    %c0_3 = arith.constant 0 : index
    %c0_4 = arith.constant 0 : index
    %5 = vector.load %arg8[%c0_3, %c0_4] : memref<64x128xf32, #tpu.memory_space<vmem>>, vector<64x128xf32>
    tpu.vector_store %arg8[%c0_3, %c0_4], %4 {strides = array<i32>} : memref<64x128xf32, #tpu.memory_space<vmem>>, vector<64x128xf32>,
    %c0_5 = arith.constant 0 : index
    %c0_6 = arith.constant 0 : index
    %6 = vector.load %arg2[%c0_5, %c0_6] : memref<128x128xf32, #tpu.memory_space<vmem>>, vector<128x128xf32>
    %c0_7 = arith.constant 0 : index
    %c0_8 = arith.constant 0 : index
    %7 = vector.load %arg3[%c0_7, %c0_8] : memref<1x128xf32, #tpu.memory_space<vmem>>, vector<1x128xf32>
    %8 = vector.shape_cast %7 : vector<1x128xf32> to vector<1x128xf32>
    %9 = vector.broadcast %8 : vector<1x128xf32> to vector<8x128xf32>
    %c0_9 = arith.constant 0 : index
    %c0_10 = arith.constant 0 : index
    %10 = vector.load %arg4[%c0_9, %c0_10] : memref<1x128xf32, #tpu.memory_space<vmem>>, vector<1x128xf32>
    %11 = vector.shape_cast %10 : vector<1x128xf32> to vector<1x128xf32>
    %12 = vector.broadcast %11 : vector<1x128xf32> to vector<8x128xf32>
    %cst = arith.constant 0.000000e+00 : f32
    %13 = vector.broadcast %cst : f32 to vector<8x128xf32>
    %c0_i32 = arith.constant 0 : i32
    %c8_i32 = arith.constant 8 : i32
    %14 = arith.muli %c0_i32, %c8_i32 : i32
    %15 = tpu.assume_multiple %14, 8 : i32
    %16 = arith.index_cast %15 : i32 to index
    %c0_11 = arith.constant 0 : index
    %17 = vector.load %arg8[%16, %c0_11] : memref<64x128xf32, #tpu.memory_space<vmem>>, vector<8x128xf32>
    %cst_12 = arith.constant dense<0.000000e+00> : vector<8x128xf32>
    %18 = tpu.matmul %13, %6, %cst_12 {dimension_numbers = #tpu.dot_dimension_numbers<[1], [0], [0], [1], [0, 0, 1, 1], [], []>} : vector<8x128xf32>, vector<128x128xf32>, vector<8x128xf32> -> vector<8x128xf32>
    %19 = arith.addf %17, %18 : vector<8x128xf32>
    %20 = arith.mulf %13, %12 : vector<8x128xf32>
    %21 = math.tanh %19 : vector<8x128xf32>
    %22 = arith.mulf %21, %9 : vector<8x128xf32>
    %23 = arith.addf %20, %22 : vector<8x128xf32>
    %c1_i32 = arith.constant 1 : i32
    %c8_i32_13 = arith.constant 8 : i32
    %24 = arith.muli %c1_i32, %c8_i32_13 : i32
    %25 = tpu.assume_multiple %24, 8 : i32
    %26 = arith.index_cast %25 : i32 to index
    %c0_14 = arith.constant 0 : index
    %27 = vector.load %arg8[%26, %c0_14] : memref<64x128xf32, #tpu.memory_space<vmem>>, vector<8x128xf32>
    %cst_15 = arith.constant dense<0.000000e+00> : vector<8x128xf32>
    %28 = tpu.matmul %23, %6, %cst_15 {dimension_numbers = #tpu.dot_dimension_numbers<[1], [0], [0], [1], [0, 0, 1, 1], [], []>} : vector<8x128xf32>, vector<128x128xf32>, vector<8x128xf32> -> vector<8x128xf32>
    %29 = arith.addf %27, %28 : vector<8x128xf32>
    %30 = arith.mulf %23, %12 : vector<8x128xf32>
    %31 = math.tanh %29 : vector<8x128xf32>
    %32 = arith.mulf %31, %9 : vector<8x128xf32>
    %33 = arith.addf %30, %32 : vector<8x128xf32>
    %c2_i32 = arith.constant 2 : i32
    %c8_i32_16 = arith.constant 8 : i32
    %34 = arith.muli %c2_i32, %c8_i32_16 : i32
    %35 = tpu.assume_multiple %34, 8 : i32
    %36 = arith.index_cast %35 : i32 to index
    %c0_17 = arith.constant 0 : index
    %37 = vector.load %arg8[%36, %c0_17] : memref<64x128xf32, #tpu.memory_space<vmem>>, vector<8x128xf32>
    %cst_18 = arith.constant dense<0.000000e+00> : vector<8x128xf32>
    %38 = tpu.matmul %33, %6, %cst_18 {dimension_numbers = #tpu.dot_dimension_numbers<[1], [0], [0], [1], [0, 0, 1, 1], [], []>} : vector<8x128xf32>, vector<128x128xf32>, vector<8x128xf32> -> vector<8x128xf32>
    %39 = arith.addf %37, %38 : vector<8x128xf32>
    %40 = arith.mulf %33, %12 : vector<8x128xf32>
    %41 = math.tanh %39 : vector<8x128xf32>
    %42 = arith.mulf %41, %9 : vector<8x128xf32>
    %43 = arith.addf %40, %42 : vector<8x128xf32>
    %c3_i32 = arith.constant 3 : i32
    %c8_i32_19 = arith.constant 8 : i32
    %44 = arith.muli %c3_i32, %c8_i32_19 : i32
    %45 = tpu.assume_multiple %44, 8 : i32
    %46 = arith.index_cast %45 : i32 to index
    %c0_20 = arith.constant 0 : index
    %47 = vector.load %arg8[%46, %c0_20] : memref<64x128xf32, #tpu.memory_space<vmem>>, vector<8x128xf32>
    %cst_21 = arith.constant dense<0.000000e+00> : vector<8x128xf32>
    %48 = tpu.matmul %43, %6, %cst_21 {dimension_numbers = #tpu.dot_dimension_numbers<[1], [0], [0], [1], [0, 0, 1, 1], [], []>} : vector<8x128xf32>, vector<128x128xf32>, vector<8x128xf32> -> vector<8x128xf32>
    %49 = arith.addf %47, %48 : vector<8x128xf32>
    %50 = arith.mulf %43, %12 : vector<8x128xf32>
    %51 = math.tanh %49 : vector<8x128xf32>
    %52 = arith.mulf %51, %9 : vector<8x128xf32>
    %53 = arith.addf %50, %52 : vector<8x128xf32>
    %c4_i32 = arith.constant 4 : i32
    %c8_i32_22 = arith.constant 8 : i32
    %54 = arith.muli %c4_i32, %c8_i32_22 : i32
    %55 = tpu.assume_multiple %54, 8 : i32
    %56 = arith.index_cast %55 : i32 to index
    %c0_23 = arith.constant 0 : index
    %57 = vector.load %arg8[%56, %c0_23] : memref<64x128xf32, #tpu.memory_space<vmem>>, vector<8x128xf32>
    %cst_24 = arith.constant dense<0.000000e+00> : vector<8x128xf32>
    %58 = tpu.matmul %53, %6, %cst_24 {dimension_numbers = #tpu.dot_dimension_numbers<[1], [0], [0], [1], [0, 0, 1, 1], [], []>} : vector<8x128xf32>, vector<128x128xf32>, vector<8x128xf32> -> vector<8x128xf32>
    %59 = arith.addf %57, %58 : vector<8x128xf32>
    %60 = arith.mulf %53, %12 : vector<8x128xf32>
    %61 = math.tanh %59 : vector<8x128xf32>
    %62 = arith.mulf %61, %9 : vector<8x128xf32>
    %63 = arith.addf %60, %62 : vector<8x128xf32>
    %c5_i32 = arith.constant 5 : i32
    %c8_i32_25 = arith.constant 8 : i32
    %64 = arith.muli %c5_i32, %c8_i32_25 : i32
    %65 = tpu.assume_multiple %64, 8 : i32
    %66 = arith.index_cast %65 : i32 to index
    %c0_26 = arith.constant 0 : index
    %67 = vector.load %arg8[%66, %c0_26] : memref<64x128xf32, #tpu.memory_space<vmem>>, vector<8x128xf32>
    %cst_27 = arith.constant dense<0.000000e+00> : vector<8x128xf32>
    %68 = tpu.matmul %63, %6, %cst_27 {dimension_numbers = #tpu.dot_dimension_numbers<[1], [0], [0], [1], [0, 0, 1, 1], [], []>} : vector<8x128xf32>, vector<128x128xf32>, vector<8x128xf32> -> vector<8x128xf32>
    %69 = arith.addf %67, %68 : vector<8x128xf32>
    %70 = arith.mulf %63, %12 : vector<8x128xf32>
    %71 = math.tanh %69 : vector<8x128xf32>
    %72 = arith.mulf %71, %9 : vector<8x128xf32>
    %73 = arith.addf %70, %72 : vector<8x128xf32>
    %c6_i32 = arith.constant 6 : i32
    %c8_i32_28 = arith.constant 8 : i32
    %74 = arith.muli %c6_i32, %c8_i32_28 : i32
    %75 = tpu.assume_multiple %74, 8 : i32
    %76 = arith.index_cast %75 : i32 to index
    %c0_29 = arith.constant 0 : index
    %77 = vector.load %arg8[%76, %c0_29] : memref<64x128xf32, #tpu.memory_space<vmem>>, vector<8x128xf32>
    %cst_30 = arith.constant dense<0.000000e+00> : vector<8x128xf32>
    %78 = tpu.matmul %73, %6, %cst_30 {dimension_numbers = #tpu.dot_dimension_numbers<[1], [0], [0], [1], [0, 0, 1, 1], [], []>} : vector<8x128xf32>, vector<128x128xf32>, vector<8x128xf32> -> vector<8x128xf32>
    %79 = arith.addf %77, %78 : vector<8x128xf32>
    %80 = arith.mulf %73, %12 : vector<8x128xf32>
    %81 = math.tanh %79 : vector<8x128xf32>
    %82 = arith.mulf %81, %9 : vector<8x128xf32>
    %83 = arith.addf %80, %82 : vector<8x128xf32>
    %c7_i32 = arith.constant 7 : i32
    %c8_i32_31 = arith.constant 8 : i32
    %84 = arith.muli %c7_i32, %c8_i32_31 : i32
    %85 = tpu.assume_multiple %84, 8 : i32
    %86 = arith.index_cast %85 : i32 to index
    %c0_32 = arith.constant 0 : index
    %87 = vector.load %arg8[%86, %c0_32] : memref<64x128xf32, #tpu.memory_space<vmem>>, vector<8x128xf32>
    %cst_33 = arith.constant dense<0.000000e+00> : vector<8x128xf32>
    %88 = tpu.matmul %83, %6, %cst_33 {dimension_numbers = #tpu.dot_dimension_numbers<[1], [0], [0], [1], [0, 0, 1, 1], [], []>} : vector<8x128xf32>, vector<128x128xf32>, vector<8x128xf32> -> vector<8x128xf32>
    %89 = arith.addf %87, %88 : vector<8x128xf32>
    %90 = arith.mulf %83, %12 : vector<8x128xf32>
    %91 = math.tanh %89 : vector<8x128xf32>
    %92 = arith.mulf %91, %9 : vector<8x128xf32>
    %93 = arith.addf %90, %92 : vector<8x128xf32>
    %c8_i32_34 = arith.constant 8 : i32
    %c0_35 = arith.constant 0 : index
    %c0_36 = arith.constant 0 : index
    %94 = vector.load %arg5[%c0_35, %c0_36] : memref<1x128xf32, #tpu.memory_space<vmem>>, vector<1x128xf32>
    %95 = vector.broadcast %94 : vector<1x128xf32> to vector<8x128xf32>
    %96 = arith.mulf %93, %95 : vector<8x128xf32>
    %cst_37 = arith.constant dense<0.000000e+00> : vector<8xf32>
    %97 = vector.multi_reduction <add>, %96, %cst_37 [1] : vector<8x128xf32> to vector<8xf32>
    %98 = vector.shape_cast %97 : vector<8xf32> to vector<8x1xf32>
    %c0_38 = arith.constant 0 : index
    %c0_39 = arith.constant 0 : index
    %99 = memref.load %arg6[%c0_38, %c0_39] : memref<1x1xf32, #tpu.memory_space<smem>>
    %100 = vector.broadcast %99 : f32 to vector<8x1xf32>
    %101 = arith.addf %98, %100 : vector<8x1xf32>
    %c0_40 = arith.constant 0 : index
    %c0_41 = arith.constant 0 : index
    %102 = vector.load %arg7[%c0_40, %c0_41] : memref<8x1xf32, #tpu.memory_space<vmem>>, vector<8x1xf32>
    tpu.vector_store %arg7[%c0_40, %c0_41], %101 {strides = array<i32>} : memref<8x1xf32, #tpu.memory_space<vmem>>, vector<8x1xf32>,
    return
  }
}

</mosaic_0001>

<llo_original>
// kernel: lnn_apply.1
$region0: #{lnn_apply.1}
  #allocation0 [shape = 'u32[]', space=smem, size = 0x4, offset = 0x4, fixed_abs, tag = 'smem constant byte address 0x4 - core index']
  #allocation1 [shape = 'u32[144,128]{1,0:T(1,128)}', space=vmem, size = 0x12000, scoped, tag = 'internal scratch']
  #allocation2 [shape = 'f32[64,128]{1,0:T(8,128)}', space=vmem, size = 0x8000, scoped, tag = 'scratch operand']
  #allocation3 [shape = 'f32[1,1]{1,0:T(1,128)S(6)}', space=smem, size = 0x200, scoped, tag = 'scoped memory for lnn_apply.1']
  %s0 = inlined_call_operand.vmem [shape: f32[64,1], index: 0, kind: input, shape index: {}]
  %s1 = inlined_call_operand.vmem [shape: f32[1,128], index: 1, kind: input, shape index: {}]
  %s2 = inlined_call_operand.hbm [shape: f32[128,128], index: 2, kind: input, shape index: {}]
  %s3 = inlined_call_operand.vmem [shape: f32[1,128], index: 3, kind: input, shape index: {}]
  %s4 = inlined_call_operand.vmem [shape: f32[1,128], index: 4, kind: input, shape index: {}]
  %s5 = inlined_call_operand.vmem [shape: f32[1,128], index: 5, kind: input, shape index: {}]
  %s6 = inlined_call_operand.<no memory space> [shape: f32[1,1], index: 6, kind: input, shape index: {}]
  %s7 = inlined_call_operand.vmem [shape: f32[8,1], index: 7, kind: output, shape index: {}]
  %s8 = sld [smem:[#allocation0]]
  $region42: #{lnn_apply.1} parent=0
    _
  %s10 = ssub.s32 1, %s8
  %s11 = scalar_select 0, %s10, %s8
  %12 = sst [smem:[#allocation3]] %s6
  $region1: #{lnn_apply.1} parent=0
    #allocation4 [shape = 'u8[65536]{0}', space=vmem, size = 0x10000, scoped, tag = 'input window, operand 2, single buffered']
    #allocation5 [shape = 's32[1]{0}', space=sflag, size = 0x4, scoped, tag = 'scoped memory for lnn_apply.1']
    %13 = vsyncpa [#allocation5], 0
    // Predicated region
    $region2: #{lnn_apply.1} parent=1 // pred_check
      _
    $region3: #{lnn_apply.1} parent=1 // pred_check_branch
      %15 = sbr.rel (0) target = $region5
    $region4: #{lnn_apply.1} parent=1 // pred_region
      _
    $region5: #{lnn_apply.1} parent=1 // pred_fallthru
      _
    // Predicated region
    $region6: #{lnn_apply.1} parent=1 // pred_check
      _
    $region7: #{lnn_apply.1} parent=1 // pred_check_branch
      %17 = sbr.rel (0) target = $region9
    $region8: #{lnn_apply.1} parent=1 // pred_region
      _
    $region9: #{lnn_apply.1} parent=1 // pred_fallthru
      _
    // Predicated region
    $region10: #{lnn_apply.1} parent=1 // pred_check
      _
    $region11: #{lnn_apply.1} parent=1 // pred_check_branch
      %19 = sbr.rel (0) target = $region13
    $region12: #{lnn_apply.1} parent=1 // pred_region
      %s21 = ssub.s32 2048, 2048
      %22 = vsyncadd [#allocation5], %s21
      %s23 = sshll.u32 [#allocation4], 4
      %s24 = int_to_ptr.vmem [resolvable:$true] %s23
      %29 = dma.hbm_to_vmem [thread:$0]  %s2, 2048, %s24, [#allocation5], 128, 128, 8
    $region13: #{lnn_apply.1} parent=1 // pred_fallthru
      _
    // Predicated region
    $region14: #{lnn_apply.1} parent=1 // pred_check
      _
    $region15: #{lnn_apply.1} parent=1 // pred_check_branch
      %31 = sbr.rel (0) target = $region17
    $region16: #{lnn_apply.1} parent=1 // pred_region
      _
    $region17: #{lnn_apply.1} parent=1 // pred_fallthru
      _
    // Predicated region
    $region18: #{lnn_apply.1} parent=1 // pred_check
      _
    $region19: #{lnn_apply.1} parent=1 // pred_check_branch
      %33 = sbr.rel (0) target = $region21
    $region20: #{lnn_apply.1} parent=1 // pred_region
      _
    $region21: #{lnn_apply.1} parent=1 // pred_fallthru
      _
    // Predicated region
    $region22: #{lnn_apply.1} parent=1 // pred_check
      _
    $region23: #{lnn_apply.1} parent=1 // pred_check_branch
      %35 = sbr.rel (0) target = $region25
    $region24: #{lnn_apply.1} parent=1 // pred_region
      _
    $region25: #{lnn_apply.1} parent=1 // pred_fallthru
      _
    // Predicated region
    $region26: #{lnn_apply.1} parent=1 // pred_check
      _
    $region27: #{lnn_apply.1} parent=1 // pred_check_branch
      %37 = sbr.rel (0) target = $region29
    $region28: #{lnn_apply.1} parent=1 // pred_region
      _
    $region29: #{lnn_apply.1} parent=1 // pred_fallthru
      _
    // Predicated region
    $region30: #{lnn_apply.1} parent=1 // pred_check
      _
    $region31: #{lnn_apply.1} parent=1 // pred_check_branch
      %39 = sbr.rel (0) target = $region33
    $region32: #{lnn_apply.1} parent=1 // pred_region
      %40 = dma.done [#allocation5], 2048
    $region33: #{lnn_apply.1} parent=1 // pred_fallthru
      _
    %v41 = vld [vmem:[%s0] sm:$0xff]
    %v42 = vld [vmem:[%s0 + $0x8] sm:$0xff]
    %v43 = vld [vmem:[%s0 + $0x10] sm:$0xff]
    %v44 = vld [vmem:[%s0 + $0x18] sm:$0xff]
    %v45 = vld [vmem:[%s0 + $0x20] sm:$0xff]
    %v46 = vld [vmem:[%s0 + $0x28] sm:$0xff]
    %v47 = vld [vmem:[%s0 + $0x30] sm:$0xff]
    %v48 = vld [vmem:[%s0 + $0x38] sm:$0xff]
    %v49 = vld [vmem:[%s1] sm:$0x1]
    %51 = vset.pattern.permute.xlu0 0
    %52 = vperm.xlu0 %51, %v41
    %v53 = vpop.permute.xlu0 %52
    %56 = vset.pattern.permute.xlu0 0
    %57 = vperm.xlu0 %56, %v42
    %v58 = vpop.permute.xlu0 %57
    %61 = vset.pattern.permute.xlu0 0
    %62 = vperm.xlu0 %61, %v43
    %v63 = vpop.permute.xlu0 %62
    %66 = vset.pattern.permute.xlu0 0
    %67 = vperm.xlu0 %66, %v44
    %v68 = vpop.permute.xlu0 %67
    %71 = vset.pattern.permute.xlu0 0
    %72 = vperm.xlu0 %71, %v45
    %v73 = vpop.permute.xlu0 %72
    %76 = vset.pattern.permute.xlu0 0
    %77 = vperm.xlu0 %76, %v46
    %v78 = vpop.permute.xlu0 %77
    %81 = vset.pattern.permute.xlu0 0
    %82 = vperm.xlu0 %81, %v47
    %v83 = vpop.permute.xlu0 %82
    %86 = vset.pattern.permute.xlu0 0
    %87 = vperm.xlu0 %86, %v48
    %v88 = vpop.permute.xlu0 %87
    %v91 = vlaneseq
    %v92 = vshrl.u32 %v91, 7
    %v93 = vsub.s32 0, %v92
    %v94 = vrot.slane %v49, %v93
    %v96 = vmul.f32 %v53, %v94
    %v97 = vmul.f32 %v58, %v94
    %v98 = vmul.f32 %v63, %v94
    %v99 = vmul.f32 %v68, %v94
    %v100 = vmul.f32 %v73, %v94
    %v101 = vmul.f32 %v78, %v94
    %v102 = vmul.f32 %v83, %v94
    %v103 = vmul.f32 %v88, %v94
    %104 = vst [vmem:[#allocation2] sm:$0xff] %v96
    %105 = vst [vmem:[#allocation2 + $0x8] sm:$0xff] %v97
    %106 = vst [vmem:[#allocation2 + $0x10] sm:$0xff] %v98
    %107 = vst [vmem:[#allocation2 + $0x18] sm:$0xff] %v99
    %108 = vst [vmem:[#allocation2 + $0x20] sm:$0xff] %v100
    %109 = vst [vmem:[#allocation2 + $0x28] sm:$0xff] %v101
    %110 = vst [vmem:[#allocation2 + $0x30] sm:$0xff] %v102
    %111 = vst [vmem:[#allocation2 + $0x38] sm:$0xff] %v103
    %v112 = vld [vmem:[#allocation4] sm:$0xff]
    %v113 = vld [vmem:[#allocation4 + $0x8] sm:$0xff]
    %v114 = vld [vmem:[#allocation4 + $0x10] sm:$0xff]
    %v115 = vld [vmem:[#allocation4 + $0x18] sm:$0xff]
    %v116 = vld [vmem:[#allocation4 + $0x20] sm:$0xff]
    %v117 = vld [vmem:[#allocation4 + $0x28] sm:$0xff]
    %v118 = vld [vmem:[#allocation4 + $0x30] sm:$0xff]
    %v119 = vld [vmem:[#allocation4 + $0x38] sm:$0xff]
    %v120 = vld [vmem:[#allocation4 + $0x40] sm:$0xff]
    %v121 = vld [vmem:[#allocation4 + $0x48] sm:$0xff]
    %v122 = vld [vmem:[#allocation4 + $0x50] sm:$0xff]
    %v123 = vld [vmem:[#allocation4 + $0x58] sm:$0xff]
    %v124 = vld [vmem:[#allocation4 + $0x60] sm:$0xff]
    %v125 = vld [vmem:[#allocation4 + $0x68] sm:$0xff]
    %v126 = vld [vmem:[#allocation4 + $0x70] sm:$0xff]
    %v127 = vld [vmem:[#allocation4 + $0x78] sm:$0xff]
    %v128 = vld [vmem:[%s3] sm:$0x1]
    %v130 = vlaneseq
    %v131 = vshrl.u32 %v130, 7
    %v132 = vsub.s32 0, %v131
    %v133 = vrot.slane %v128, %v132
    %v135 = vld [vmem:[%s4] sm:$0x1]
    %v137 = vlaneseq
    %v138 = vshrl.u32 %v137, 7
    %v139 = vsub.s32 0, %v138
    %v140 = vrot.slane %v135, %v139
    %v142 = vld [vmem:[#allocation2] sm:$0xff]
    %143 = vmatprep.subr.mxu0 0.0
    %144 = vmatpush1.msra.mxu0 %v127
    %145 = vmatprep.subr.mxu0 0.0
    %146 = vmatpush1.msra.mxu0 %v126
    %147 = vmatprep.subr.mxu0 0.0
    %148 = vmatpush1.msra.mxu0 %v125
    %149 = vmatprep.subr.mxu0 0.0
    %150 = vmatpush1.msra.mxu0 %v124
    %151 = vmatprep.subr.mxu0 0.0
    %152 = vmatpush1.msra.mxu0 %v123
    %153 = vmatprep.subr.mxu0 0.0
    %154 = vmatpush1.msra.mxu0 %v122
    %155 = vmatprep.subr.mxu0 0.0
    %156 = vmatpush1.msra.mxu0 %v121
    %157 = vmatprep.subr.mxu0 0.0
    %158 = vmatpush1.msra.mxu0 %v120
    %159 = vmatprep.subr.mxu0 0.0
    %160 = vmatpush1.msra.mxu0 %v119
    %161 = vmatprep.subr.mxu0 0.0
    %162 = vmatpush1.msra.mxu0 %v118
    %163 = vmatprep.subr.mxu0 0.0
    %164 = vmatpush1.msra.mxu0 %v117
    %165 = vmatprep.subr.mxu0 0.0
    %166 = vmatpush1.msra.mxu0 %v116
    %167 = vmatprep.subr.mxu0 0.0
    %168 = vmatpush1.msra.mxu0 %v115
    %169 = vmatprep.subr.mxu0 0.0
    %170 = vmatpush1.msra.mxu0 %v114
    %171 = vmatprep.subr.mxu0 0.0
    %172 = vmatpush1.msra.mxu0 %v113
    %173 = vmatprep.subr.mxu0 0.0
    %174 = vmatpush1.msra.mxu0 %v112
    %175 = vmatprep.subr.mxu0 0.0
    %176 = vmatpush2.msra.mxu0 0.0
    %177 = vmatprep.subr.mxu0 0.0
    %178 = vmatpush2.msra.mxu0 0.0
    %179 = vmatprep.subr.mxu0 0.0
    %180 = vmatpush2.msra.mxu0 0.0
    %181 = vmatprep.subr.mxu0 0.0
    %182 = vmatpush2.msra.mxu0 0.0
    %183 = vmatprep.subr.mxu0 0.0
    %184 = vmatpush2.msra.mxu0 0.0
    %185 = vmatprep.subr.mxu0 0.0
    %186 = vmatpush2.msra.mxu0 0.0
    %187 = vmatprep.subr.mxu0 0.0
    %188 = vmatpush2.msra.mxu0 0.0
    %189 = vmatprep.subr.mxu0 0.0
    %190 = vmatpush2.msra.mxu0 0.0
    %191 = vmatprep.subr.mxu0 0.0
    %192 = vmatpush2.msra.mxu0 0.0
    %193 = vmatprep.subr.mxu0 0.0
    %194 = vmatpush2.msra.mxu0 0.0
    %195 = vmatprep.subr.mxu0 0.0
    %196 = vmatpush2.msra.mxu0 0.0
    %197 = vmatprep.subr.mxu0 0.0
    %198 = vmatpush2.msra.mxu0 0.0
    %199 = vmatprep.subr.mxu0 0.0
    %200 = vmatpush2.msra.mxu0 0.0
    %201 = vmatprep.subr.mxu0 0.0
    %202 = vmatpush2.msra.mxu0 0.0
    %203 = vmatprep.subr.mxu0 0.0
    %204 = vmatpush2.msra.mxu0 0.0
    %205 = vmatprep.subr.mxu0 0.0
    %206 = vmatpush2.msra.mxu0 0.0
    %207 = vmatprep.mubr.f32.mxu0 0.0
    %208 = vmatmul.mubr.f32.gmra.mxu0 0.0
    %v209 = vpop.f32.mrf.mxu0
    %v210 = vadd.f32 0.0, %v209
    %v211 = vpop.f32.mrf.mxu0
    %212 = vdwg.mxu0
    %v213 = vadd.f32 %v142, %v210
    %v214 = vmul.f32 %v140, 0.0
    %v215 = vtanh.pop %v213
    %v216 = vmul.f32 %v215, %v133
    %v217 = vadd.f32 %v214, %v216
    %s218 = scalar_lea.vmem [#allocation2], 8
    %v219 = vld [vmem:[%s218] sm:$0xff]
    %220 = vmatprep.subr.mxu0 0.0
    %221 = vmatpush1.msra.mxu0 %v127
    %222 = vmatprep.subr.mxu0 0.0
    %223 = vmatpush1.msra.mxu0 %v126
    %224 = vmatprep.subr.mxu0 0.0
    %225 = vmatpush1.msra.mxu0 %v125
    %226 = vmatprep.subr.mxu0 0.0
    %227 = vmatpush1.msra.mxu0 %v124
    %228 = vmatprep.subr.mxu0 0.0
    %229 = vmatpush1.msra.mxu0 %v123
    %230 = vmatprep.subr.mxu0 0.0
    %231 = vmatpush1.msra.mxu0 %v122
    %232 = vmatprep.subr.mxu0 0.0
    %233 = vmatpush1.msra.mxu0 %v121
    %234 = vmatprep.subr.mxu0 0.0
    %235 = vmatpush1.msra.mxu0 %v120
    %236 = vmatprep.subr.mxu0 0.0
    %237 = vmatpush1.msra.mxu0 %v119
    %238 = vmatprep.subr.mxu0 0.0
    %239 = vmatpush1.msra.mxu0 %v118
    %240 = vmatprep.subr.mxu0 0.0
    %241 = vmatpush1.msra.mxu0 %v117
    %242 = vmatprep.subr.mxu0 0.0
    %243 = vmatpush1.msra.mxu0 %v116
    %244 = vmatprep.subr.mxu0 0.0
    %245 = vmatpush1.msra.mxu0 %v115
    %246 = vmatprep.subr.mxu0 0.0
    %247 = vmatpush1.msra.mxu0 %v114
    %248 = vmatprep.subr.mxu0 0.0
    %249 = vmatpush1.msra.mxu0 %v113
    %250 = vmatprep.subr.mxu0 0.0
    %251 = vmatpush1.msra.mxu0 %v112
    %252 = vmatprep.subr.mxu0 0.0
    %253 = vmatpush2.msra.mxu0 0.0
    %254 = vmatprep.subr.mxu0 0.0
    %255 = vmatpush2.msra.mxu0 0.0
    %256 = vmatprep.subr.mxu0 0.0
    %257 = vmatpush2.msra.mxu0 0.0
    %258 = vmatprep.subr.mxu0 0.0
    %259 = vmatpush2.msra.mxu0 0.0
    %260 = vmatprep.subr.mxu0 0.0
    %261 = vmatpush2.msra.mxu0 0.0
    %262 = vmatprep.subr.mxu0 0.0
    %263 = vmatpush2.msra.mxu0 0.0
    %264 = vmatprep.subr.mxu0 0.0
    %265 = vmatpush2.msra.mxu0 0.0
    %266 = vmatprep.subr.mxu0 0.0
    %267 = vmatpush2.msra.mxu0 0.0
    %268 = vmatprep.subr.mxu0 0.0
    %269 = vmatpush2.msra.mxu0 0.0
    %270 = vmatprep.subr.mxu0 0.0
    %271 = vmatpush2.msra.mxu0 0.0
    %272 = vmatprep.subr.mxu0 0.0
    %273 = vmatpush2.msra.mxu0 0.0
    %274 = vmatprep.subr.mxu0 0.0
    %275 = vmatpush2.msra.mxu0 0.0
    %276 = vmatprep.subr.mxu0 0.0
    %277 = vmatpush2.msra.mxu0 0.0
    %278 = vmatprep.subr.mxu0 0.0
    %279 = vmatpush2.msra.mxu0 0.0
    %280 = vmatprep.subr.mxu0 0.0
    %281 = vmatpush2.msra.mxu0 0.0
    %282 = vmatprep.subr.mxu0 0.0
    %283 = vmatpush2.msra.mxu0 0.0
    %284 = vmatprep.mubr.f32.mxu0 0.0
    %285 = vmatmul.mubr.f32.gmra.mxu0 %v217
    %v286 = vpop.f32.mrf.mxu0
    %v287 = vadd.f32 0.0, %v286
    %v288 = vpop.f32.mrf.mxu0
    %289 = vdwg.mxu0
    %v290 = vadd.f32 %v219, %v287
    %v291 = vmul.f32 %v217, %v140
    %v292 = vtanh.pop %v290
    %v293 = vmul.f32 %v292, %v133
    %v294 = vadd.f32 %v291, %v293
    %s295 = scalar_lea.vmem [#allocation2], 16
    %v296 = vld [vmem:[%s295] sm:$0xff]
    %297 = vmatprep.subr.mxu0 0.0
    %298 = vmatpush1.msra.mxu0 %v127
    %299 = vmatprep.subr.mxu0 0.0
    %300 = vmatpush1.msra.mxu0 %v126
    %301 = vmatprep.subr.mxu0 0.0
    %302 = vmatpush1.msra.mxu0 %v125
    %303 = vmatprep.subr.mxu0 0.0
    %304 = vmatpush1.msra.mxu0 %v124
    %305 = vmatprep.subr.mxu0 0.0
    %306 = vmatpush1.msra.mxu0 %v123
    %307 = vmatprep.subr.mxu0 0.0
    %308 = vmatpush1.msra.mxu0 %v122
    %309 = vmatprep.subr.mxu0 0.0
    %310 = vmatpush1.msra.mxu0 %v121
    %311 = vmatprep.subr.mxu0 0.0
    %312 = vmatpush1.msra.mxu0 %v120
    %313 = vmatprep.subr.mxu0 0.0
    %314 = vmatpush1.msra.mxu0 %v119
    %315 = vmatprep.subr.mxu0 0.0
    %316 = vmatpush1.msra.mxu0 %v118
    %317 = vmatprep.subr.mxu0 0.0
    %318 = vmatpush1.msra.mxu0 %v117
    %319 = vmatprep.subr.mxu0 0.0
    %320 = vmatpush1.msra.mxu0 %v116
    %321 = vmatprep.subr.mxu0 0.0
    %322 = vmatpush1.msra.mxu0 %v115
    %323 = vmatprep.subr.mxu0 0.0
    %324 = vmatpush1.msra.mxu0 %v114
    %325 = vmatprep.subr.mxu0 0.0
    %326 = vmatpush1.msra.mxu0 %v113
    %327 = vmatprep.subr.mxu0 0.0
    %328 = vmatpush1.msra.mxu0 %v112
    %329 = vmatprep.subr.mxu0 0.0
    %330 = vmatpush2.msra.mxu0 0.0
    %331 = vmatprep.subr.mxu0 0.0
    %332 = vmatpush2.msra.mxu0 0.0
    %333 = vmatprep.subr.mxu0 0.0
    %334 = vmatpush2.msra.mxu0 0.0
    %335 = vmatprep.subr.mxu0 0.0
    %336 = vmatpush2.msra.mxu0 0.0
    %337 = vmatprep.subr.mxu0 0.0
    %338 = vmatpush2.msra.mxu0 0.0
    %339 = vmatprep.subr.mxu0 0.0
    %340 = vmatpush2.msra.mxu0 0.0
    %341 = vmatprep.subr.mxu0 0.0
    %342 = vmatpush2.msra.mxu0 0.0
    %343 = vmatprep.subr.mxu0 0.0
    %344 = vmatpush2.msra.mxu0 0.0
    %345 = vmatprep.subr.mxu0 0.0
    %346 = vmatpush2.msra.mxu0 0.0
    %347 = vmatprep.subr.mxu0 0.0
    %348 = vmatpush2.msra.mxu0 0.0
    %349 = vmatprep.subr.mxu0 0.0
    %350 = vmatpush2.msra.mxu0 0.0
    %351 = vmatprep.subr.mxu0 0.0
    %352 = vmatpush2.msra.mxu0 0.0
    %353 = vmatprep.subr.mxu0 0.0
    %354 = vmatpush2.msra.mxu0 0.0
    %355 = vmatprep.subr.mxu0 0.0
    %356 = vmatpush2.msra.mxu0 0.0
    %357 = vmatprep.subr.mxu0 0.0
    %358 = vmatpush2.msra.mxu0 0.0
    %359 = vmatprep.subr.mxu0 0.0
    %360 = vmatpush2.msra.mxu0 0.0
    %361 = vmatprep.mubr.f32.mxu0 0.0
    %362 = vmatmul.mubr.f32.gmra.mxu0 %v294
    %v363 = vpop.f32.mrf.mxu0
    %v364 = vadd.f32 0.0, %v363
    %v365 = vpop.f32.mrf.mxu0
    %366 = vdwg.mxu0
    %v367 = vadd.f32 %v296, %v364
    %v368 = vmul.f32 %v294, %v140
    %v369 = vtanh.pop %v367
    %v370 = vmul.f32 %v369, %v133
    %v371 = vadd.f32 %v368, %v370
    %s372 = scalar_lea.vmem [#allocation2], 24
    %v373 = vld [vmem:[%s372] sm:$0xff]
    %374 = vmatprep.subr.mxu0 0.0
    %375 = vmatpush1.msra.mxu0 %v127
    %376 = vmatprep.subr.mxu0 0.0
    %377 = vmatpush1.msra.mxu0 %v126
    %378 = vmatprep.subr.mxu0 0.0
    %379 = vmatpush1.msra.mxu0 %v125
    %380 = vmatprep.subr.mxu0 0.0
    %381 = vmatpush1.msra.mxu0 %v124
    %382 = vmatprep.subr.mxu0 0.0
    %383 = vmatpush1.msra.mxu0 %v123
    %384 = vmatprep.subr.mxu0 0.0
    %385 = vmatpush1.msra.mxu0 %v122
    %386 = vmatprep.subr.mxu0 0.0
    %387 = vmatpush1.msra.mxu0 %v121
    %388 = vmatprep.subr.mxu0 0.0
    %389 = vmatpush1.msra.mxu0 %v120
    %390 = vmatprep.subr.mxu0 0.0
    %391 = vmatpush1.msra.mxu0 %v119
    %392 = vmatprep.subr.mxu0 0.0
    %393 = vmatpush1.msra.mxu0 %v118
    %394 = vmatprep.subr.mxu0 0.0
    %395 = vmatpush1.msra.mxu0 %v117
    %396 = vmatprep.subr.mxu0 0.0
    %397 = vmatpush1.msra.mxu0 %v116
    %398 = vmatprep.subr.mxu0 0.0
    %399 = vmatpush1.msra.mxu0 %v115
    %400 = vmatprep.subr.mxu0 0.0
    %401 = vmatpush1.msra.mxu0 %v114
    %402 = vmatprep.subr.mxu0 0.0
    %403 = vmatpush1.msra.mxu0 %v113
    %404 = vmatprep.subr.mxu0 0.0
    %405 = vmatpush1.msra.mxu0 %v112
    %406 = vmatprep.subr.mxu0 0.0
    %407 = vmatpush2.msra.mxu0 0.0
    %408 = vmatprep.subr.mxu0 0.0
    %409 = vmatpush2.msra.mxu0 0.0
    %410 = vmatprep.subr.mxu0 0.0
    %411 = vmatpush2.msra.mxu0 0.0
    %412 = vmatprep.subr.mxu0 0.0
    %413 = vmatpush2.msra.mxu0 0.0
    %414 = vmatprep.subr.mxu0 0.0
    %415 = vmatpush2.msra.mxu0 0.0
    %416 = vmatprep.subr.mxu0 0.0
    %417 = vmatpush2.msra.mxu0 0.0
    %418 = vmatprep.subr.mxu0 0.0
    %419 = vmatpush2.msra.mxu0 0.0
    %420 = vmatprep.subr.mxu0 0.0
    %421 = vmatpush2.msra.mxu0 0.0
    %422 = vmatprep.subr.mxu0 0.0
    %423 = vmatpush2.msra.mxu0 0.0
    %424 = vmatprep.subr.mxu0 0.0
    %425 = vmatpush2.msra.mxu0 0.0
    %426 = vmatprep.subr.mxu0 0.0
    %427 = vmatpush2.msra.mxu0 0.0
    %428 = vmatprep.subr.mxu0 0.0
    %429 = vmatpush2.msra.mxu0 0.0
    %430 = vmatprep.subr.mxu0 0.0
    %431 = vmatpush2.msra.mxu0 0.0
    %432 = vmatprep.subr.mxu0 0.0
    %433 = vmatpush2.msra.mxu0 0.0
    %434 = vmatprep.subr.mxu0 0.0
    %435 = vmatpush2.msra.mxu0 0.0
    %436 = vmatprep.subr.mxu0 0.0
    %437 = vmatpush2.msra.mxu0 0.0
    %438 = vmatprep.mubr.f32.mxu0 0.0
    %439 = vmatmul.mubr.f32.gmra.mxu0 %v371
    %v440 = vpop.f32.mrf.mxu0
    %v441 = vadd.f32 0.0, %v440
    %v442 = vpop.f32.mrf.mxu0
    %443 = vdwg.mxu0
    %v444 = vadd.f32 %v373, %v441
    %v445 = vmul.f32 %v371, %v140
    %v446 = vtanh.pop %v444
    %v447 = vmul.f32 %v446, %v133
    %v448 = vadd.f32 %v445, %v447
    %s449 = scalar_lea.vmem [#allocation2], 32
    %v450 = vld [vmem:[%s449] sm:$0xff]
    %451 = vmatprep.subr.mxu0 0.0
    %452 = vmatpush1.msra.mxu0 %v127
    %453 = vmatprep.subr.mxu0 0.0
    %454 = vmatpush1.msra.mxu0 %v126
    %455 = vmatprep.subr.mxu0 0.0
    %456 = vmatpush1.msra.mxu0 %v125
    %457 = vmatprep.subr.mxu0 0.0
    %458 = vmatpush1.msra.mxu0 %v124
    %459 = vmatprep.subr.mxu0 0.0
    %460 = vmatpush1.msra.mxu0 %v123
    %461 = vmatprep.subr.mxu0 0.0
    %462 = vmatpush1.msra.mxu0 %v122
    %463 = vmatprep.subr.mxu0 0.0
    %464 = vmatpush1.msra.mxu0 %v121
    %465 = vmatprep.subr.mxu0 0.0
    %466 = vmatpush1.msra.mxu0 %v120
    %467 = vmatprep.subr.mxu0 0.0
    %468 = vmatpush1.msra.mxu0 %v119
    %469 = vmatprep.subr.mxu0 0.0
    %470 = vmatpush1.msra.mxu0 %v118
    %471 = vmatprep.subr.mxu0 0.0
    %472 = vmatpush1.msra.mxu0 %v117
    %473 = vmatprep.subr.mxu0 0.0
    %474 = vmatpush1.msra.mxu0 %v116
    %475 = vmatprep.subr.mxu0 0.0
    %476 = vmatpush1.msra.mxu0 %v115
    %477 = vmatprep.subr.mxu0 0.0
    %478 = vmatpush1.msra.mxu0 %v114
    %479 = vmatprep.subr.mxu0 0.0
    %480 = vmatpush1.msra.mxu0 %v113
    %481 = vmatprep.subr.mxu0 0.0
    %482 = vmatpush1.msra.mxu0 %v112
    %483 = vmatprep.subr.mxu0 0.0
    %484 = vmatpush2.msra.mxu0 0.0
    %485 = vmatprep.subr.mxu0 0.0
    %486 = vmatpush2.msra.mxu0 0.0
    %487 = vmatprep.subr.mxu0 0.0
    %488 = vmatpush2.msra.mxu0 0.0
    %489 = vmatprep.subr.mxu0 0.0
    %490 = vmatpush2.msra.mxu0 0.0
    %491 = vmatprep.subr.mxu0 0.0
    %492 = vmatpush2.msra.mxu0 0.0
    %493 = vmatprep.subr.mxu0 0.0
    %494 = vmatpush2.msra.mxu0 0.0
    %495 = vmatprep.subr.mxu0 0.0
    %496 = vmatpush2.msra.mxu0 0.0
    %497 = vmatprep.subr.mxu0 0.0
    %498 = vmatpush2.msra.mxu0 0.0
    %499 = vmatprep.subr.mxu0 0.0
    %500 = vmatpush2.msra.mxu0 0.0
    %501 = vmatprep.subr.mxu0 0.0
    %502 = vmatpush2.msra.mxu0 0.0
    %503 = vmatprep.subr.mxu0 0.0
    %504 = vmatpush2.msra.mxu0 0.0
    %505 = vmatprep.subr.mxu0 0.0
    %506 = vmatpush2.msra.mxu0 0.0
    %507 = vmatprep.subr.mxu0 0.0
    %508 = vmatpush2.msra.mxu0 0.0
    %509 = vmatprep.subr.mxu0 0.0
    %510 = vmatpush2.msra.mxu0 0.0
    %511 = vmatprep.subr.mxu0 0.0
    %512 = vmatpush2.msra.mxu0 0.0
    %513 = vmatprep.subr.mxu0 0.0
    %514 = vmatpush2.msra.mxu0 0.0
    %515 = vmatprep.mubr.f32.mxu0 0.0
    %516 = vmatmul.mubr.f32.gmra.mxu0 %v448
    %v517 = vpop.f32.mrf.mxu0
    %v518 = vadd.f32 0.0, %v517
    %v519 = vpop.f32.mrf.mxu0
    %520 = vdwg.mxu0
    %v521 = vadd.f32 %v450, %v518
    %v522 = vmul.f32 %v448, %v140
    %v523 = vtanh.pop %v521
    %v524 = vmul.f32 %v523, %v133
    %v525 = vadd.f32 %v522, %v524
    %s526 = scalar_lea.vmem [#allocation2], 40
    %v527 = vld [vmem:[%s526] sm:$0xff]
    %528 = vmatprep.subr.mxu0 0.0
    %529 = vmatpush1.msra.mxu0 %v127
    %530 = vmatprep.subr.mxu0 0.0
    %531 = vmatpush1.msra.mxu0 %v126
    %532 = vmatprep.subr.mxu0 0.0
    %533 = vmatpush1.msra.mxu0 %v125
    %534 = vmatprep.subr.mxu0 0.0
    %535 = vmatpush1.msra.mxu0 %v124
    %536 = vmatprep.subr.mxu0 0.0
    %537 = vmatpush1.msra.mxu0 %v123
    %538 = vmatprep.subr.mxu0 0.0
    %539 = vmatpush1.msra.mxu0 %v122
    %540 = vmatprep.subr.mxu0 0.0
    %541 = vmatpush1.msra.mxu0 %v121
    %542 = vmatprep.subr.mxu0 0.0
    %543 = vmatpush1.msra.mxu0 %v120
    %544 = vmatprep.subr.mxu0 0.0
    %545 = vmatpush1.msra.mxu0 %v119
    %546 = vmatprep.subr.mxu0 0.0
    %547 = vmatpush1.msra.mxu0 %v118
    %548 = vmatprep.subr.mxu0 0.0
    %549 = vmatpush1.msra.mxu0 %v117
    %550 = vmatprep.subr.mxu0 0.0
    %551 = vmatpush1.msra.mxu0 %v116
    %552 = vmatprep.subr.mxu0 0.0
    %553 = vmatpush1.msra.mxu0 %v115
    %554 = vmatprep.subr.mxu0 0.0
    %555 = vmatpush1.msra.mxu0 %v114
    %556 = vmatprep.subr.mxu0 0.0
    %557 = vmatpush1.msra.mxu0 %v113
    %558 = vmatprep.subr.mxu0 0.0
    %559 = vmatpush1.msra.mxu0 %v112
    %560 = vmatprep.subr.mxu0 0.0
    %561 = vmatpush2.msra.mxu0 0.0
    %562 = vmatprep.subr.mxu0 0.0
    %563 = vmatpush2.msra.mxu0 0.0
    %564 = vmatprep.subr.mxu0 0.0
    %565 = vmatpush2.msra.mxu0 0.0
    %566 = vmatprep.subr.mxu0 0.0
    %567 = vmatpush2.msra.mxu0 0.0
    %568 = vmatprep.subr.mxu0 0.0
    %569 = vmatpush2.msra.mxu0 0.0
    %570 = vmatprep.subr.mxu0 0.0
    %571 = vmatpush2.msra.mxu0 0.0
    %572 = vmatprep.subr.mxu0 0.0
    %573 = vmatpush2.msra.mxu0 0.0
    %574 = vmatprep.subr.mxu0 0.0
    %575 = vmatpush2.msra.mxu0 0.0
    %576 = vmatprep.subr.mxu0 0.0
    %577 = vmatpush2.msra.mxu0 0.0
    %578 = vmatprep.subr.mxu0 0.0
    %579 = vmatpush2.msra.mxu0 0.0
    %580 = vmatprep.subr.mxu0 0.0
    %581 = vmatpush2.msra.mxu0 0.0
    %582 = vmatprep.subr.mxu0 0.0
    %583 = vmatpush2.msra.mxu0 0.0
    %584 = vmatprep.subr.mxu0 0.0
    %585 = vmatpush2.msra.mxu0 0.0
    %586 = vmatprep.subr.mxu0 0.0
    %587 = vmatpush2.msra.mxu0 0.0
    %588 = vmatprep.subr.mxu0 0.0
    %589 = vmatpush2.msra.mxu0 0.0
    %590 = vmatprep.subr.mxu0 0.0
    %591 = vmatpush2.msra.mxu0 0.0
    %592 = vmatprep.mubr.f32.mxu0 0.0
    %593 = vmatmul.mubr.f32.gmra.mxu0 %v525
    %v594 = vpop.f32.mrf.mxu0
    %v595 = vadd.f32 0.0, %v594
    %v596 = vpop.f32.mrf.mxu0
    %597 = vdwg.mxu0
    %v598 = vadd.f32 %v527, %v595
    %v599 = vmul.f32 %v525, %v140
    %v600 = vtanh.pop %v598
    %v601 = vmul.f32 %v600, %v133
    %v602 = vadd.f32 %v599, %v601
    %s603 = scalar_lea.vmem [#allocation2], 48
    %v604 = vld [vmem:[%s603] sm:$0xff]
    %605 = vmatprep.subr.mxu0 0.0
    %606 = vmatpush1.msra.mxu0 %v127
    %607 = vmatprep.subr.mxu0 0.0
    %608 = vmatpush1.msra.mxu0 %v126
    %609 = vmatprep.subr.mxu0 0.0
    %610 = vmatpush1.msra.mxu0 %v125
    %611 = vmatprep.subr.mxu0 0.0
    %612 = vmatpush1.msra.mxu0 %v124
    %613 = vmatprep.subr.mxu0 0.0
    %614 = vmatpush1.msra.mxu0 %v123
    %615 = vmatprep.subr.mxu0 0.0
    %616 = vmatpush1.msra.mxu0 %v122
    %617 = vmatprep.subr.mxu0 0.0
    %618 = vmatpush1.msra.mxu0 %v121
    %619 = vmatprep.subr.mxu0 0.0
    %620 = vmatpush1.msra.mxu0 %v120
    %621 = vmatprep.subr.mxu0 0.0
    %622 = vmatpush1.msra.mxu0 %v119
    %623 = vmatprep.subr.mxu0 0.0
    %624 = vmatpush1.msra.mxu0 %v118
    %625 = vmatprep.subr.mxu0 0.0
    %626 = vmatpush1.msra.mxu0 %v117
    %627 = vmatprep.subr.mxu0 0.0
    %628 = vmatpush1.msra.mxu0 %v116
    %629 = vmatprep.subr.mxu0 0.0
    %630 = vmatpush1.msra.mxu0 %v115
    %631 = vmatprep.subr.mxu0 0.0
    %632 = vmatpush1.msra.mxu0 %v114
    %633 = vmatprep.subr.mxu0 0.0
    %634 = vmatpush1.msra.mxu0 %v113
    %635 = vmatprep.subr.mxu0 0.0
    %636 = vmatpush1.msra.mxu0 %v112
    %637 = vmatprep.subr.mxu0 0.0
    %638 = vmatpush2.msra.mxu0 0.0
    %639 = vmatprep.subr.mxu0 0.0
    %640 = vmatpush2.msra.mxu0 0.0
    %641 = vmatprep.subr.mxu0 0.0
    %642 = vmatpush2.msra.mxu0 0.0
    %643 = vmatprep.subr.mxu0 0.0
    %644 = vmatpush2.msra.mxu0 0.0
    %645 = vmatprep.subr.mxu0 0.0
    %646 = vmatpush2.msra.mxu0 0.0
    %647 = vmatprep.subr.mxu0 0.0
    %648 = vmatpush2.msra.mxu0 0.0
    %649 = vmatprep.subr.mxu0 0.0
    %650 = vmatpush2.msra.mxu0 0.0
    %651 = vmatprep.subr.mxu0 0.0
    %652 = vmatpush2.msra.mxu0 0.0
    %653 = vmatprep.subr.mxu0 0.0
    %654 = vmatpush2.msra.mxu0 0.0
    %655 = vmatprep.subr.mxu0 0.0
    %656 = vmatpush2.msra.mxu0 0.0
    %657 = vmatprep.subr.mxu0 0.0
    %658 = vmatpush2.msra.mxu0 0.0
    %659 = vmatprep.subr.mxu0 0.0
    %660 = vmatpush2.msra.mxu0 0.0
    %661 = vmatprep.subr.mxu0 0.0
    %662 = vmatpush2.msra.mxu0 0.0
    %663 = vmatprep.subr.mxu0 0.0
    %664 = vmatpush2.msra.mxu0 0.0
    %665 = vmatprep.subr.mxu0 0.0
    %666 = vmatpush2.msra.mxu0 0.0
    %667 = vmatprep.subr.mxu0 0.0
    %668 = vmatpush2.msra.mxu0 0.0
    %669 = vmatprep.mubr.f32.mxu0 0.0
    %670 = vmatmul.mubr.f32.gmra.mxu0 %v602
    %v671 = vpop.f32.mrf.mxu0
    %v672 = vadd.f32 0.0, %v671
    %v673 = vpop.f32.mrf.mxu0
    %674 = vdwg.mxu0
    %v675 = vadd.f32 %v604, %v672
    %v676 = vmul.f32 %v602, %v140
    %v677 = vtanh.pop %v675
    %v678 = vmul.f32 %v677, %v133
    %v679 = vadd.f32 %v676, %v678
    %s680 = scalar_lea.vmem [#allocation2], 56
    %v681 = vld [vmem:[%s680] sm:$0xff]
    %682 = vmatprep.subr.mxu0 0.0
    %683 = vmatpush1.msra.mxu0 %v127
    %684 = vmatprep.subr.mxu0 0.0
    %685 = vmatpush1.msra.mxu0 %v126
    %686 = vmatprep.subr.mxu0 0.0
    %687 = vmatpush1.msra.mxu0 %v125
    %688 = vmatprep.subr.mxu0 0.0
    %689 = vmatpush1.msra.mxu0 %v124
    %690 = vmatprep.subr.mxu0 0.0
    %691 = vmatpush1.msra.mxu0 %v123
    %692 = vmatprep.subr.mxu0 0.0
    %693 = vmatpush1.msra.mxu0 %v122
    %694 = vmatprep.subr.mxu0 0.0
    %695 = vmatpush1.msra.mxu0 %v121
    %696 = vmatprep.subr.mxu0 0.0
    %697 = vmatpush1.msra.mxu0 %v120
    %698 = vmatprep.subr.mxu0 0.0
    %699 = vmatpush1.msra.mxu0 %v119
    %700 = vmatprep.subr.mxu0 0.0
    %701 = vmatpush1.msra.mxu0 %v118
    %702 = vmatprep.subr.mxu0 0.0
    %703 = vmatpush1.msra.mxu0 %v117
    %704 = vmatprep.subr.mxu0 0.0
    %705 = vmatpush1.msra.mxu0 %v116
    %706 = vmatprep.subr.mxu0 0.0
    %707 = vmatpush1.msra.mxu0 %v115
    %708 = vmatprep.subr.mxu0 0.0
    %709 = vmatpush1.msra.mxu0 %v114
    %710 = vmatprep.subr.mxu0 0.0
    %711 = vmatpush1.msra.mxu0 %v113
    %712 = vmatprep.subr.mxu0 0.0
    %713 = vmatpush1.msra.mxu0 %v112
    %714 = vmatprep.subr.mxu0 0.0
    %715 = vmatpush2.msra.mxu0 0.0
    %716 = vmatprep.subr.mxu0 0.0
    %717 = vmatpush2.msra.mxu0 0.0
    %718 = vmatprep.subr.mxu0 0.0
    %719 = vmatpush2.msra.mxu0 0.0
    %720 = vmatprep.subr.mxu0 0.0
    %721 = vmatpush2.msra.mxu0 0.0
    %722 = vmatprep.subr.mxu0 0.0
    %723 = vmatpush2.msra.mxu0 0.0
    %724 = vmatprep.subr.mxu0 0.0
    %725 = vmatpush2.msra.mxu0 0.0
    %726 = vmatprep.subr.mxu0 0.0
    %727 = vmatpush2.msra.mxu0 0.0
    %728 = vmatprep.subr.mxu0 0.0
    %729 = vmatpush2.msra.mxu0 0.0
    %730 = vmatprep.subr.mxu0 0.0
    %731 = vmatpush2.msra.mxu0 0.0
    %732 = vmatprep.subr.mxu0 0.0
    %733 = vmatpush2.msra.mxu0 0.0
    %734 = vmatprep.subr.mxu0 0.0
    %735 = vmatpush2.msra.mxu0 0.0
    %736 = vmatprep.subr.mxu0 0.0
    %737 = vmatpush2.msra.mxu0 0.0
    %738 = vmatprep.subr.mxu0 0.0
    %739 = vmatpush2.msra.mxu0 0.0
    %740 = vmatprep.subr.mxu0 0.0
    %741 = vmatpush2.msra.mxu0 0.0
    %742 = vmatprep.subr.mxu0 0.0
    %743 = vmatpush2.msra.mxu0 0.0
    %744 = vmatprep.subr.mxu0 0.0
    %745 = vmatpush2.msra.mxu0 0.0
    %746 = vmatprep.mubr.f32.mxu0 0.0
    %747 = vmatmul.mubr.f32.gmra.mxu0 %v679
    %v748 = vpop.f32.mrf.mxu0
    %v749 = vadd.f32 0.0, %v748
    %v750 = vpop.f32.mrf.mxu0
    %751 = vdwg.mxu0
    %v752 = vadd.f32 %v681, %v749
    %v753 = vmul.f32 %v679, %v140
    %v754 = vtanh.pop %v752
    %v755 = vmul.f32 %v754, %v133
    %v756 = vadd.f32 %v753, %v755
    %v757 = vld [vmem:[%s5] sm:$0x1]
    %v759 = vlaneseq
    %v760 = vshrl.u32 %v759, 7
    %v761 = vsub.s32 0, %v760
    %v762 = vrot.slane %v757, %v761
    %v764 = vmul.f32 %v756, %v762
    %765 = vadd.xlane.f32.xlu0 %v764
    %v766 = vpop.xlane.xlu0 %765
    %s767 = sld [smem:[#allocation3]]
    %v768 = vstv %s767
    %v769 = vadd.f32 %v766, %v768
    %vm770 = vcmask 7168
    %771 = vst.msk [vmem:[%s7] sm:$0xff] %vm770, %v769
    // Predicated region
    $region34: #{lnn_apply.1} parent=1 // pred_check
      _
    $region35: #{lnn_apply.1} parent=1 // pred_check_branch
      %773 = sbr.rel (0) target = $region37
    $region36: #{lnn_apply.1} parent=1 // pred_region
      _
    $region37: #{lnn_apply.1} parent=1 // pred_fallthru
      _
    // Predicated region
    $region38: #{lnn_apply.1} parent=1 // pred_check
      _
    $region39: #{lnn_apply.1} parent=1 // pred_check_branch
      %775 = sbr.rel (0) target = $region41
    $region40: #{lnn_apply.1} parent=1 // pred_region
      _
    $region41: #{lnn_apply.1} parent=1 // pred_fallthru
      _
    %776 = vsyncpa [#allocation5], 1

</llo_original>
